<compile_context>
chip_gen: v7x
topology: tpu7x:2x2x1
jax: 0.10.0
libtpu: 0.0.40
codegen_flags: <defaults>
</compile_context>

<pallas_src>
import functools

import jax
import jax.numpy as jnp
from jax.experimental import pallas as pl
from jax.experimental.pallas import tpu as pltpu


def _round_up(x, m):
    return (x + m - 1) // m * m


def _tpu_caps():
    """(vmem_capacity_bytes, preferred_output_lanes) with conservative fallbacks."""
    vmem = 64 << 20          # v7x per-TensorCore VMEM = smallest of v5e/v6e/v7x
    lanes = 128              # safe on every generation (v5e MXU is 128 wide)
    try:
        info = pltpu.get_tpu_info()
        vmem = int(getattr(info, "vmem_capacity_bytes", vmem)) or vmem
        ver = getattr(info, "chip_version", None)
        name = str(getattr(ver, "name", ver) or "").upper()
        if any(t in name for t in ("V6", "V7", "TPU6", "TPU7", "TRILLIUM")):
            lanes = 256      # v6e/v7x MXU tiles are 256 wide -> 256-lane packed outputs
    except Exception:        # no TPU visible (e.g. interpret mode on CPU)
        pass
    return vmem, lanes


def _embed_kernel(ids_ref, w_ref, *rest, vocab, pack, chunk_rows, multi_chunk,
                  has_dropout):
    """One grid step: one-hot(id chunk) @ table chunk on the MXU (+ dropout scale).

    ids_ref : (tbp, pack) int32          pack consecutive token ids per packed row
    w_ref   : (chunk_rows, pack*Dp)      (block-diagonal when pack>1) table chunk
    rest    : [scale_ref (tbp, pack*Dp) f32]?, out_ref (tbp, pack*Dp), [acc_ref f32]?
    """
    idx = 0
    scale_ref = None
    if has_dropout:
        scale_ref = rest[idx]; idx += 1
    out_ref = rest[idx]; idx += 1
    acc_ref = rest[idx] if multi_chunk else None

    tbp = out_ref.shape[0]
    ids = ids_ref[...]                                        # (tbp, pack)
    chunk_start = pl.program_id(1) * chunk_rows

    # One-hot over this table chunk, built with int compares only (VPU); column band s
    # corresponds to packed slot s, so one MXU matmul against the block-diagonal table
    # emits the packed, lane-dense layout directly.
    col = jax.lax.broadcasted_iota(jnp.int32, (tbp, chunk_rows), 1)
    hit = col == (ids[:, 0:1] - chunk_start)
    for s in range(1, pack):                                  # static unroll, pack <= 16
        hit = hit | (col == (ids[:, s:s + 1] + s * vocab - chunk_start))
    onehot = hit.astype(w_ref.dtype)

    part = jnp.dot(onehot, w_ref[...], preferred_element_type=jnp.float32)

    if multi_chunk:
        @pl.when(pl.program_id(1) == 0)
        def _():
            acc_ref[...] = jnp.zeros_like(acc_ref)

        acc_ref[...] += part

        @pl.when(pl.program_id(1) == pl.num_programs(1) - 1)
        def _():
            res = acc_ref[...]
            if has_dropout:
                res = res * scale_ref[...]
            out_ref[...] = res.astype(out_ref.dtype)
    else:
        if has_dropout:
            part = part * scale_ref[...]
        out_ref[...] = part.astype(out_ref.dtype)


class PallasWordEmbeddingLayer:
    """Pallas equivalent of WordEmbeddingLayer: y = Dropout(Embedding(W)(x)).

    The (possibly packed / padded / chunked) table layout is computed once here and
    reused by every forward call.
    """

    def __init__(self, W, dropout=0.0, *, table_dtype=None, token_block=1024,
                 max_table_block_bytes=None):
        W = jnp.asarray(W)
        self.V, self.D = int(W.shape[0]), int(W.shape[1])
        self.p = float(dropout)
        self.out_dtype = W.dtype
        if table_dtype is not None:              # optional bf16 table: halves VMEM,
            W = W.astype(table_dtype)            # one-hot 0/1 stays exact in bf16
        it = jnp.dtype(W.dtype).itemsize
        self.table_it = it

        vmem_cap, lanes = _tpu_caps()
        self.vmem_cap = vmem_cap
        self.budget = int(vmem_cap * 0.8)

        # ---- lane geometry: always lane-dense output tiles --------------------------
        V, D = self.V, self.D
        pack, Dp = 1, (D if D % 128 == 0 else _round_up(D, 128))
        if D % 128 != 0:
            for lt in ((256, 128) if lanes >= 256 else (128,)):
                if lt % D == 0:
                    cand = lt // D
                    # block-diagonal replica costs cand^2 * V * D bytes; only pack if cheap
                    if (cand * V) * (cand * D) * it <= min(self.budget // 4, 8 << 20):
                        pack, Dp = cand, D
                        break
        self.pack, self.Dp = pack, Dp
        cols = pack * Dp
        self.cols = cols

        # ---- table layout: VMEM-resident (possibly block-diagonal) or HBM-streamed --
        rows = pack * V
        resident_bytes = rows * cols * it
        resident_cap = (self.budget // 2 if max_table_block_bytes is None
                        else int(max_table_block_bytes))
        if pack > 1 or resident_bytes <= resident_cap:
            self.multi_chunk = False
            self.chunk_rows = rows
            self.nvb = 1
            if pack > 1:
                # block-diagonal replication -> MXU emits the packed layout directly
                table = jnp.kron(jnp.eye(pack, dtype=W.dtype), W)       # (pack*V, pack*D)
            else:
                table = jnp.pad(W, ((0, 0), (0, Dp - D))) if Dp != D else W
        else:
            # stream the table in (chunk_rows, cols) tiles; accumulate in VMEM scratch
            self.multi_chunk = True
            per_chunk_cap = max(resident_cap, 8 * cols * it * 2)
            chunk_rows = max(8, min(_round_up(rows, 8),
                                    (per_chunk_cap // (2 * cols * it)) // 8 * 8))
            rows_pad = _round_up(rows, chunk_rows)
            self.chunk_rows = chunk_rows
            self.nvb = rows_pad // chunk_rows
            table = jnp.pad(W, ((0, rows_pad - rows), (0, Dp - D)))
        self.table = table
        self.table_bufs = 1 if not self.multi_chunk else 2
        self.token_block = int(token_block)

    # ---- per-grid-step VMEM estimate (table bufs + one-hot temps + tiles) -----------
    def _per_step_vmem(self, tbp, train):
        it, cols = self.table_it, self.cols
        onehot = tbp * self.chunk_rows * (4 + 4 + 4)          # iota + mask + one-hot temps
        table = self.table_bufs * self.chunk_rows * cols * it
        out = 2 * tbp * cols * jnp.dtype(self.out_dtype).itemsize
        acc = tbp * cols * 4 if self.multi_chunk else 0
        ids = 2 * tbp * 128 * 4                               # id tile is lane-padded
        scale = 2 * tbp * cols * 4 if train else 0
        return onehot + table + out + acc + ids + scale

    def __call__(self, x, *, train=False, rng=None):
        B, S = x.shape
        V, D, Dp, pack, cols = self.V, self.D, self.Dp, self.pack, self.cols
        N = B * S
        has_dropout = bool(train) and self.p > 0.0

        # ---- token-block sizing under the VMEM budget -------------------------------
        n_rows_needed = pl.cdiv(N, pack)
        tbp = max(8, min(_round_up(n_rows_needed, 8),
                         max(8, (self.token_block // pack) // 8 * 8)))
        while tbp > 8 and self._per_step_vmem(tbp, has_dropout) > self.budget:
            tbp = max(8, (tbp // 2) // 8 * 8)
        n_rows_total = _round_up(n_rows_needed, tbp)
        grid_i = n_rows_total // tbp
        n_tok_total = n_rows_total * pack

        vmem_limit = min(int(self.vmem_cap * 0.9),
                         max(32 << 20, 2 * self._per_step_vmem(tbp, has_dropout)))

        # ---- inputs ------------------------------------------------------------------
        # NOTE: nn.Embedding raises on out-of-range ids; we clamp instead.
        ids = jnp.clip(x.reshape(-1).astype(jnp.int32), 0, V - 1)
        ids = jnp.pad(ids, (0, n_tok_total - N))
        ids_packed = ids.reshape(n_rows_total, pack)
        # TODO(synk): deliver ids as a 128-lane-dense tile (minor DMA win) without an
        # in-kernel cross-lane relayout.

        args = [ids_packed, self.table]
        if has_dropout:
            if rng is None:
                rng = jax.random.PRNGKey(0)
            keep = jax.random.bernoulli(rng, 1.0 - self.p, (n_rows_total, cols))
            scale = keep.astype(jnp.float32) * (1.0 / (1.0 - self.p))
            args.append(scale)

        kernel = functools.partial(
            _embed_kernel, vocab=V, pack=pack, chunk_rows=self.chunk_rows,
            multi_chunk=self.multi_chunk, has_dropout=has_dropout)

        def run(table_pipeline_mode):
            tkw = {} if table_pipeline_mode is None else {"pipeline_mode": table_pipeline_mode}
            in_specs = [
                pl.BlockSpec((tbp, pack), lambda i, k: (i, 0)),               # token ids
                pl.BlockSpec((self.chunk_rows, cols), lambda i, k: (k, 0), **tkw),  # table
            ]
            if has_dropout:
                in_specs.append(pl.BlockSpec((tbp, cols), lambda i, k: (i, 0)))  # dropout scale
            call = pl.pallas_call(
                kernel,
                out_shape=jax.ShapeDtypeStruct((n_rows_total, cols), self.out_dtype),
                grid=(grid_i, self.nvb),
                in_specs=in_specs,
                out_specs=pl.BlockSpec((tbp, cols), lambda i, k: (i, 0)),     # lane-dense
                scratch_shapes=([pltpu.VMEM((tbp, cols), jnp.float32)]
                                if self.multi_chunk else []),
                compiler_params=pltpu.CompilerParams(
                    dimension_semantics=("parallel", "arbitrary"),
                    vmem_limit_bytes=int(vmem_limit),
                ),
            )
            return call(*args)

        if not self.multi_chunk:
            # Constant index_map -> single-buffer the resident table (halves its VMEM).
            try:
                out = run(pl.Buffered(1))
            except Exception:
                out = run(None)   # fallback if this jax build rejects Buffered(1)
        else:
            out = run(None)

        out = out.reshape(n_rows_total * pack, Dp)[:N, :D]    # free row-major unpacking
        return out.reshape(B, S, D)


if __name__ == "__main__":
    key = jax.random.PRNGKey(0)
    k_w, k_ids, k_drop, k_w2, k_ids2 = jax.random.split(key, 5)

    # ---- config mirroring the module at small scale: V=64 vocab, D=32 embedding -----
    V, D = 64, 32
    B, S = 2, 8
    W = jax.random.normal(k_w, (V, D), dtype=jnp.float32)
    W = W.at[0].set(0.0)                      # padding row (padding_idx=0)
    x = jax.random.randint(k_ids, (B, S), 0, V, dtype=jnp.int32)
    ref = W[x]

    layer = PallasWordEmbeddingLayer(W, dropout=0.2)

    # eval mode: dropout is identity
    out = jax.block_until_ready(layer(x, train=False))
    assert out.shape == (B, S, D) and out.dtype == jnp.float32
    assert jnp.allclose(out, ref, rtol=1e-4, atol=1e-5), float(jnp.max(jnp.abs(out - ref)))

    # train mode: every element is either dropped (0) or the embedding / (1 - p)
    p = 0.2
    out_tr = jax.block_until_ready(layer(x, train=True, rng=k_drop))
    ok = jnp.isclose(out_tr, ref / (1.0 - p), rtol=1e-4, atol=1e-5) | (out_tr == 0.0)
    assert out_tr.shape == (B, S, D) and bool(jnp.all(ok))

    # ---- exercise the D-padding + vocab-chunk-streaming path ------------------------
    V2, D2 = 96, 20                           # D2 not lane friendly -> padded to 128
    W2 = jax.random.normal(k_w2, (V2, D2), dtype=jnp.float32)
    x2 = jax.random.randint(k_ids2, (3, 5), 0, V2, dtype=jnp.int32)
    layer2 = PallasWordEmbeddingLayer(W2, dropout=0.0, max_table_block_bytes=4096)
    out2 = jax.block_until_ready(layer2(x2, train=False))
    assert out2.shape == (3, 5, D2)
    assert jnp.allclose(out2, W2[x2], rtol=1e-4, atol=1e-5)

    # ---- optional bf16-table path (halves resident-table VMEM on v6e/v7x) -----------
    layer_bf16 = PallasWordEmbeddingLayer(W, dropout=0.0, table_dtype=jnp.bfloat16)
    out_bf = jax.block_until_ready(layer_bf16(x, train=False))
    assert jnp.allclose(out_bf, ref, rtol=2e-2, atol=2e-2)

    print("KERNEL_OK")
</pallas_src>

<mosaic_0001>
module attributes {stable_mosaic.version = 11 : i64} {
  func.func @_embed_kernel(%arg0: i32, %arg1: i32, %arg2: memref<8x4xi32, #tpu.memory_space<vmem>>, %arg3: memref<256x128xf32, #tpu.memory_space<vmem>>, %arg4: memref<8x128xf32, #tpu.memory_space<vmem>>) attributes {dimension_semantics = [#tpu.dimension_semantics<parallel>, #tpu.dimension_semantics<arbitrary>], iteration_bounds = array<i64: 1, 1>, scalar_prefetch = 0 : i64, scratch_operands = 0 : i64, tpu.core_type = #tpu.core_type<tc>, window_params = [{transform_indices = @transform_0, window_bounds = array<i64: 8, 4>}, {pipeline_mode = #tpu.pipeline_mode<synchronous>, transform_indices = @transform_1, window_bounds = array<i64: 256, 128>}, {transform_indices = @transform_2, window_bounds = array<i64: 8, 128>}]} {
    %c0 = arith.constant 0 : index
    %c0_0 = arith.constant 0 : index
    %0 = vector.load %arg2[%c0, %c0_0] : memref<8x4xi32, #tpu.memory_space<vmem>>, vector<8x4xi32>
    %c256_i32 = arith.constant 256 : i32
    %1 = arith.muli %arg1, %c256_i32 : i32
    %2 = tpu.iota {dimensions = array<i32: 1>} : vector<8x256xi32>
    %3 = vector.extract_strided_slice %0 {offsets = [0, 0], sizes = [8, 1], strides = [1, 1]} : vector<8x4xi32> to vector<8x1xi32>
    %4 = vector.broadcast %1 : i32 to vector<8x1xi32>
    %5 = arith.subi %3, %4 : vector<8x1xi32>
    %6 = vector.broadcast %5 : vector<8x1xi32> to vector<8x256xi32>
    %7 = arith.cmpi eq, %2, %6 : vector<8x256xi32>
    %8 = vector.extract_strided_slice %0 {offsets = [0, 1], sizes = [8, 1], strides = [1, 1]} : vector<8x4xi32> to vector<8x1xi32>
    %c64_i32 = arith.constant 64 : i32
    %9 = vector.broadcast %c64_i32 : i32 to vector<8x1xi32>
    %10 = arith.addi %8, %9 : vector<8x1xi32>
    %11 = vector.broadcast %1 : i32 to vector<8x1xi32>
    %12 = arith.subi %10, %11 : vector<8x1xi32>
    %13 = vector.broadcast %12 : vector<8x1xi32> to vector<8x256xi32>
    %14 = arith.cmpi eq, %2, %13 : vector<8x256xi32>
    %15 = arith.ori %7, %14 : vector<8x256xi1>
    %16 = vector.extract_strided_slice %0 {offsets = [0, 2], sizes = [8, 1], strides = [1, 1]} : vector<8x4xi32> to vector<8x1xi32>
    %c128_i32 = arith.constant 128 : i32
    %17 = vector.broadcast %c128_i32 : i32 to vector<8x1xi32>
    %18 = arith.addi %16, %17 : vector<8x1xi32>
    %19 = vector.broadcast %1 : i32 to vector<8x1xi32>
    %20 = arith.subi %18, %19 : vector<8x1xi32>
    %21 = vector.broadcast %20 : vector<8x1xi32> to vector<8x256xi32>
    %22 = arith.cmpi eq, %2, %21 : vector<8x256xi32>
    %23 = arith.ori %15, %22 : vector<8x256xi1>
    %24 = vector.extract_strided_slice %0 {offsets = [0, 3], sizes = [8, 1], strides = [1, 1]} : vector<8x4xi32> to vector<8x1xi32>
    %c192_i32 = arith.constant 192 : i32
    %25 = vector.broadcast %c192_i32 : i32 to vector<8x1xi32>
    %26 = arith.addi %24, %25 : vector<8x1xi32>
    %27 = vector.broadcast %1 : i32 to vector<8x1xi32>
    %28 = arith.subi %26, %27 : vector<8x1xi32>
    %29 = vector.broadcast %28 : vector<8x1xi32> to vector<8x256xi32>
    %30 = arith.cmpi eq, %2, %29 : vector<8x256xi32>
    %31 = arith.ori %23, %30 : vector<8x256xi1>
    %32 = arith.extui %31 : vector<8x256xi1> to vector<8x256xi32>
    %33 = arith.sitofp %32 : vector<8x256xi32> to vector<8x256xf32>
    %c0_1 = arith.constant 0 : index
    %c0_2 = arith.constant 0 : index
    %34 = vector.load %arg3[%c0_1, %c0_2] : memref<256x128xf32, #tpu.memory_space<vmem>>, vector<256x128xf32>
    %cst = arith.constant dense<0.000000e+00> : vector<8x128xf32>
    %35 = tpu.matmul %33, %34, %cst {dimension_numbers = #tpu.dot_dimension_numbers<[1], [0], [0], [1], [0, 0, 1, 1], [], []>} : vector<8x256xf32>, vector<256x128xf32>, vector<8x128xf32> -> vector<8x128xf32>
    %c0_3 = arith.constant 0 : index
    %c0_4 = arith.constant 0 : index
    %36 = vector.load %arg4[%c0_3, %c0_4] : memref<8x128xf32, #tpu.memory_space<vmem>>, vector<8x128xf32>
    tpu.vector_store %arg4[%c0_3, %c0_4], %35 {strides = array<i32>} : memref<8x128xf32, #tpu.memory_space<vmem>>, vector<8x128xf32>,
    return
  }
  func.func @transform_0(%arg0: i32, %arg1: i32) -> (i32, i32) {
    %c0_i32 = arith.constant 0 : i32
    %c0_i32_0 = arith.constant 0 : i32
    return %arg0, %c0_i32 : i32, i32
  }
  func.func @transform_1(%arg0: i32, %arg1: i32) -> (i32, i32) {
    %c0_i32 = arith.constant 0 : i32
    %c0_i32_0 = arith.constant 0 : i32
    return %arg1, %c0_i32 : i32, i32
  }
  func.func @transform_2(%arg0: i32, %arg1: i32) -> (i32, i32) {
    %c0_i32 = arith.constant 0 : i32
    %c0_i32_0 = arith.constant 0 : i32
    return %arg0, %c0_i32 : i32, i32
  }
}

module attributes {stable_mosaic.version = 11 : i64} {
  func.func @_embed_kernel(%arg0: i32, %arg1: i32, %arg2: memref<8x4xi32, #tpu.memory_space<vmem>>, %arg3: memref<256x128xf32, #tpu.memory_space<vmem>>, %arg4: memref<8x128xf32, #tpu.memory_space<vmem>>) attributes {dimension_semantics = [#tpu.dimension_semantics<parallel>, #tpu.dimension_semantics<arbitrary>], iteration_bounds = array<i64: 1, 1>, scalar_prefetch = 0 : i64, scratch_operands = 0 : i64, tpu.core_type = #tpu.core_type<tc>, window_params = [{transform_indices = @transform_0, window_bounds = array<i64: 8, 4>}, {transform_indices = @transform_1, window_bounds = array<i64: 256, 128>}, {transform_indices = @transform_2, window_bounds = array<i64: 8, 128>}]} {
    %c0 = arith.constant 0 : index
    %c0_0 = arith.constant 0 : index
    %0 = vector.load %arg2[%c0, %c0_0] : memref<8x4xi32, #tpu.memory_space<vmem>>, vector<8x4xi32>
    %c256_i32 = arith.constant 256 : i32
    %1 = arith.muli %arg1, %c256_i32 : i32
    %2 = tpu.iota {dimensions = array<i32: 1>} : vector<8x256xi32>
    %3 = vector.extract_strided_slice %0 {offsets = [0, 0], sizes = [8, 1], strides = [1, 1]} : vector<8x4xi32> to vector<8x1xi32>
    %4 = vector.broadcast %1 : i32 to vector<8x1xi32>
    %5 = arith.subi %3, %4 : vector<8x1xi32>
    %6 = vector.broadcast %5 : vector<8x1xi32> to vector<8x256xi32>
    %7 = arith.cmpi eq, %2, %6 : vector<8x256xi32>
    %8 = vector.extract_strided_slice %0 {offsets = [0, 1], sizes = [8, 1], strides = [1, 1]} : vector<8x4xi32> to vector<8x1xi32>
    %c64_i32 = arith.constant 64 : i32
    %9 = vector.broadcast %c64_i32 : i32 to vector<8x1xi32>
    %10 = arith.addi %8, %9 : vector<8x1xi32>
    %11 = vector.broadcast %1 : i32 to vector<8x1xi32>
    %12 = arith.subi %10, %11 : vector<8x1xi32>
    %13 = vector.broadcast %12 : vector<8x1xi32> to vector<8x256xi32>
    %14 = arith.cmpi eq, %2, %13 : vector<8x256xi32>
    %15 = arith.ori %7, %14 : vector<8x256xi1>
    %16 = vector.extract_strided_slice %0 {offsets = [0, 2], sizes = [8, 1], strides = [1, 1]} : vector<8x4xi32> to vector<8x1xi32>
    %c128_i32 = arith.constant 128 : i32
    %17 = vector.broadcast %c128_i32 : i32 to vector<8x1xi32>
    %18 = arith.addi %16, %17 : vector<8x1xi32>
    %19 = vector.broadcast %1 : i32 to vector<8x1xi32>
    %20 = arith.subi %18, %19 : vector<8x1xi32>
    %21 = vector.broadcast %20 : vector<8x1xi32> to vector<8x256xi32>
    %22 = arith.cmpi eq, %2, %21 : vector<8x256xi32>
    %23 = arith.ori %15, %22 : vector<8x256xi1>
    %24 = vector.extract_strided_slice %0 {offsets = [0, 3], sizes = [8, 1], strides = [1, 1]} : vector<8x4xi32> to vector<8x1xi32>
    %c192_i32 = arith.constant 192 : i32
    %25 = vector.broadcast %c192_i32 : i32 to vector<8x1xi32>
    %26 = arith.addi %24, %25 : vector<8x1xi32>
    %27 = vector.broadcast %1 : i32 to vector<8x1xi32>
    %28 = arith.subi %26, %27 : vector<8x1xi32>
    %29 = vector.broadcast %28 : vector<8x1xi32> to vector<8x256xi32>
    %30 = arith.cmpi eq, %2, %29 : vector<8x256xi32>
    %31 = arith.ori %23, %30 : vector<8x256xi1>
    %32 = arith.extui %31 : vector<8x256xi1> to vector<8x256xi32>
    %33 = arith.sitofp %32 : vector<8x256xi32> to vector<8x256xf32>
    %c0_1 = arith.constant 0 : index
    %c0_2 = arith.constant 0 : index
    %34 = vector.load %arg3[%c0_1, %c0_2] : memref<256x128xf32, #tpu.memory_space<vmem>>, vector<256x128xf32>
    %cst = arith.constant dense<0.000000e+00> : vector<8x128xf32>
    %35 = tpu.matmul %33, %34, %cst {dimension_numbers = #tpu.dot_dimension_numbers<[1], [0], [0], [1], [0, 0, 1, 1], [], []>} : vector<8x256xf32>, vector<256x128xf32>, vector<8x128xf32> -> vector<8x128xf32>
    %c0_3 = arith.constant 0 : index
    %c0_4 = arith.constant 0 : index
    %36 = vector.load %arg4[%c0_3, %c0_4] : memref<8x128xf32, #tpu.memory_space<vmem>>, vector<8x128xf32>
    tpu.vector_store %arg4[%c0_3, %c0_4], %35 {strides = array<i32>} : memref<8x128xf32, #tpu.memory_space<vmem>>, vector<8x128xf32>,
    return
  }
  func.func @transform_0(%arg0: i32, %arg1: i32) -> (i32, i32) {
    %c0_i32 = arith.constant 0 : i32
    %c0_i32_0 = arith.constant 0 : i32
    return %arg0, %c0_i32 : i32, i32
  }
  func.func @transform_1(%arg0: i32, %arg1: i32) -> (i32, i32) {
    %c0_i32 = arith.constant 0 : i32
    %c0_i32_0 = arith.constant 0 : i32
    return %arg1, %c0_i32 : i32, i32
  }
  func.func @transform_2(%arg0: i32, %arg1: i32) -> (i32, i32) {
    %c0_i32 = arith.constant 0 : i32
    %c0_i32_0 = arith.constant 0 : i32
    return %arg0, %c0_i32 : i32, i32
  }
}

</mosaic_0001>

<llo_original>
// kernel: tpu_custom_call.1
$region0: #{tpu_custom_call.1}
  #allocation0 [shape = 'u32[]', space=smem, size = 0x4, offset = 0x4, fixed_abs, tag = 'smem constant byte address 0x4 - core index']
  #allocation1 [shape = 'u32[144,128]{1,0:T(1,128)}', space=vmem, size = 0x12000, scoped, tag = 'internal scratch']
  %s0 = inlined_call_operand.vmem [shape: s32[8,4], index: 0, kind: input, shape index: {}]
  %s1 = inlined_call_operand.hbm [shape: f32[256,128], index: 1, kind: input, shape index: {}]
  %s2 = inlined_call_operand.hbm [shape: f32[8,128], index: 2, kind: output, shape index: {}]
  %s3 = sld [smem:[#allocation0]]
  $region22: #{tpu_custom_call.1} parent=0
    _
  %s5 = ssub.s32 1, %s3
  %s6 = scalar_select 0, %s5, %s3
  $region1: #{tpu_custom_call.1} parent=0
    #allocation2 [shape = 'u8[131072]{0}', space=vmem, size = 0x20000, scoped, tag = 'input window, operand 1, single buffered']
    #allocation3 [shape = 's32[1]{0}', space=sflag, size = 0x4, scoped, tag = 'scoped memory for tpu_custom_call.1']
    #allocation4 [shape = 's32[1]{0}', space=sflag, size = 0x4, scoped, tag = 'scoped memory for tpu_custom_call.1']
    #allocation5 [shape = 'u8[4096]{0}', space=vmem, size = 0x1000, scoped, tag = 'output window, operand 0, single buffered']
    %7 = vsyncpa [#allocation3], 0
    %8 = vsyncpa [#allocation4], 0
    // Predicated region
    $region2: #{tpu_custom_call.1} parent=1 // pred_check
      _
    $region3: #{tpu_custom_call.1} parent=1 // pred_check_branch
      %10 = sbr.rel (0) target = $region5
    $region4: #{tpu_custom_call.1} parent=1 // pred_region
      _
    $region5: #{tpu_custom_call.1} parent=1 // pred_fallthru
      _
    // Predicated region
    $region6: #{tpu_custom_call.1} parent=1 // pred_check
      _
    $region7: #{tpu_custom_call.1} parent=1 // pred_check_branch
      %12 = sbr.rel (0) target = $region9
    $region8: #{tpu_custom_call.1} parent=1 // pred_region
      %s14 = ssub.s32 4096, 4096
      %15 = vsyncadd [#allocation3], %s14
      %s16 = sshll.u32 [#allocation2], 4
      %s17 = int_to_ptr.vmem [resolvable:$true] %s16
      %22 = dma.hbm_to_vmem [thread:$0]  %s1, 4096, %s17, [#allocation3], 128, 128, 8
    $region9: #{tpu_custom_call.1} parent=1 // pred_fallthru
      _
    // Predicated region
    $region10: #{tpu_custom_call.1} parent=1 // pred_check
      _
    $region11: #{tpu_custom_call.1} parent=1 // pred_check_branch
      %24 = sbr.rel (0) target = $region13
    $region12: #{tpu_custom_call.1} parent=1 // pred_region
      %25 = dma.done [#allocation3], 4096
    $region13: #{tpu_custom_call.1} parent=1 // pred_fallthru
      _
    %v26 = vld [vmem:[%s0] sm:$0xff]
    %s27 = smul.u32 0, 256
    %v28 = vlaneseq
    %v29 = vand.u32 %v28, 127
    %v30 = vadd.s32 %v29, 128
    %v31 = vstv %s27
    %v32 = vsub.s32 %v26, %v31
    %33 = vset.pattern.permute.xlu0 0
    %34 = vperm.xlu0 %33, %v32
    %v35 = vpop.permute.xlu0 %34
    %vm36 = vcmp.eq.s32.totalorder %v29, %v35
    %vm37 = vcmp.eq.s32.totalorder %v30, %v35
    %v38 = vadd.s32 %v26, 64
    %v39 = vsub.s32 %v38, %v31
    %40 = vset.pattern.permute.xlu0 1
    %41 = vperm.xlu0 %40, %v39
    %v42 = vpop.permute.xlu0 %41
    %vm43 = vcmp.eq.s32.totalorder %v29, %v42
    %vm44 = vcmp.eq.s32.totalorder %v30, %v42
    %vm45 = vmor %vm36, %vm43
    %vm46 = vmor %vm37, %vm44
    %v47 = vadd.s32 %v26, 128
    %v48 = vsub.s32 %v47, %v31
    %49 = vset.pattern.permute.xlu0 2
    %50 = vperm.xlu0 %49, %v48
    %v51 = vpop.permute.xlu0 %50
    %vm52 = vcmp.eq.s32.totalorder %v29, %v51
    %vm53 = vcmp.eq.s32.totalorder %v30, %v51
    %vm54 = vmor %vm45, %vm52
    %vm55 = vmor %vm46, %vm53
    %v56 = vadd.s32 %v26, 192
    %v57 = vsub.s32 %v56, %v31
    %58 = vset.pattern.permute.xlu0 3
    %59 = vperm.xlu0 %58, %v57
    %v60 = vpop.permute.xlu0 %59
    %vm61 = vcmp.eq.s32.totalorder %v29, %v60
    %vm62 = vcmp.eq.s32.totalorder %v30, %v60
    %vm63 = vmor %vm54, %vm61
    %vm64 = vmor %vm55, %vm62
    %v65 = vsel %vm63, 1, 0
    %v66 = vsel %vm64, 1, 0
    %v67 = vcvt.s32.f32 %v65
    %v68 = vcvt.s32.f32 %v66
    %v69 = vld [vmem:[#allocation2] sm:$0xff]
    %v70 = vld [vmem:[#allocation2 + $0x8] sm:$0xff]
    %v71 = vld [vmem:[#allocation2 + $0x10] sm:$0xff]
    %v72 = vld [vmem:[#allocation2 + $0x18] sm:$0xff]
    %v73 = vld [vmem:[#allocation2 + $0x20] sm:$0xff]
    %v74 = vld [vmem:[#allocation2 + $0x28] sm:$0xff]
    %v75 = vld [vmem:[#allocation2 + $0x30] sm:$0xff]
    %v76 = vld [vmem:[#allocation2 + $0x38] sm:$0xff]
    %v77 = vld [vmem:[#allocation2 + $0x40] sm:$0xff]
    %v78 = vld [vmem:[#allocation2 + $0x48] sm:$0xff]
    %v79 = vld [vmem:[#allocation2 + $0x50] sm:$0xff]
    %v80 = vld [vmem:[#allocation2 + $0x58] sm:$0xff]
    %v81 = vld [vmem:[#allocation2 + $0x60] sm:$0xff]
    %v82 = vld [vmem:[#allocation2 + $0x68] sm:$0xff]
    %v83 = vld [vmem:[#allocation2 + $0x70] sm:$0xff]
    %v84 = vld [vmem:[#allocation2 + $0x78] sm:$0xff]
    %v85 = vld [vmem:[#allocation2 + $0x80] sm:$0xff]
    %v86 = vld [vmem:[#allocation2 + $0x88] sm:$0xff]
    %v87 = vld [vmem:[#allocation2 + $0x90] sm:$0xff]
    %v88 = vld [vmem:[#allocation2 + $0x98] sm:$0xff]
    %v89 = vld [vmem:[#allocation2 + $0xa0] sm:$0xff]
    %v90 = vld [vmem:[#allocation2 + $0xa8] sm:$0xff]
    %v91 = vld [vmem:[#allocation2 + $0xb0] sm:$0xff]
    %v92 = vld [vmem:[#allocation2 + $0xb8] sm:$0xff]
    %v93 = vld [vmem:[#allocation2 + $0xc0] sm:$0xff]
    %v94 = vld [vmem:[#allocation2 + $0xc8] sm:$0xff]
    %v95 = vld [vmem:[#allocation2 + $0xd0] sm:$0xff]
    %v96 = vld [vmem:[#allocation2 + $0xd8] sm:$0xff]
    %v97 = vld [vmem:[#allocation2 + $0xe0] sm:$0xff]
    %v98 = vld [vmem:[#allocation2 + $0xe8] sm:$0xff]
    %v99 = vld [vmem:[#allocation2 + $0xf0] sm:$0xff]
    %v100 = vld [vmem:[#allocation2 + $0xf8] sm:$0xff]
    %101 = vmatprep.subr.mxu0 0.0
    %102 = vmatpush1.msra.mxu0 %v69
    %103 = vmatprep.subr.mxu0 0.0
    %104 = vmatpush1.msra.mxu0 %v70
    %105 = vmatprep.subr.mxu0 0.0
    %106 = vmatpush1.msra.mxu0 %v71
    %107 = vmatprep.subr.mxu0 0.0
    %108 = vmatpush1.msra.mxu0 %v72
    %109 = vmatprep.subr.mxu0 0.0
    %110 = vmatpush1.msra.mxu0 %v73
    %111 = vmatprep.subr.mxu0 0.0
    %112 = vmatpush1.msra.mxu0 %v74
    %113 = vmatprep.subr.mxu0 0.0
    %114 = vmatpush1.msra.mxu0 %v75
    %115 = vmatprep.subr.mxu0 0.0
    %116 = vmatpush1.msra.mxu0 %v76
    %117 = vmatprep.subr.mxu0 0.0
    %118 = vmatpush1.msra.mxu0 %v77
    %119 = vmatprep.subr.mxu0 0.0
    %120 = vmatpush1.msra.mxu0 %v78
    %121 = vmatprep.subr.mxu0 0.0
    %122 = vmatpush1.msra.mxu0 %v79
    %123 = vmatprep.subr.mxu0 0.0
    %124 = vmatpush1.msra.mxu0 %v80
    %125 = vmatprep.subr.mxu0 0.0
    %126 = vmatpush1.msra.mxu0 %v81
    %127 = vmatprep.subr.mxu0 0.0
    %128 = vmatpush1.msra.mxu0 %v82
    %129 = vmatprep.subr.mxu0 0.0
    %130 = vmatpush1.msra.mxu0 %v83
    %131 = vmatprep.subr.mxu0 0.0
    %132 = vmatpush1.msra.mxu0 %v84
    %133 = vmatprep.subr.mxu0 0.0
    %134 = vmatpush1.msra.mxu0 %v85
    %135 = vmatprep.subr.mxu0 0.0
    %136 = vmatpush1.msra.mxu0 %v86
    %137 = vmatprep.subr.mxu0 0.0
    %138 = vmatpush1.msra.mxu0 %v87
    %139 = vmatprep.subr.mxu0 0.0
    %140 = vmatpush1.msra.mxu0 %v88
    %141 = vmatprep.subr.mxu0 0.0
    %142 = vmatpush1.msra.mxu0 %v89
    %143 = vmatprep.subr.mxu0 0.0
    %144 = vmatpush1.msra.mxu0 %v90
    %145 = vmatprep.subr.mxu0 0.0
    %146 = vmatpush1.msra.mxu0 %v91
    %147 = vmatprep.subr.mxu0 0.0
    %148 = vmatpush1.msra.mxu0 %v92
    %149 = vmatprep.subr.mxu0 0.0
    %150 = vmatpush1.msra.mxu0 %v93
    %151 = vmatprep.subr.mxu0 0.0
    %152 = vmatpush1.msra.mxu0 %v94
    %153 = vmatprep.subr.mxu0 0.0
    %154 = vmatpush1.msra.mxu0 %v95
    %155 = vmatprep.subr.mxu0 0.0
    %156 = vmatpush1.msra.mxu0 %v96
    %157 = vmatprep.subr.mxu0 0.0
    %158 = vmatpush1.msra.mxu0 %v97
    %159 = vmatprep.subr.mxu0 0.0
    %160 = vmatpush1.msra.mxu0 %v98
    %161 = vmatprep.subr.mxu0 0.0
    %162 = vmatpush1.msra.mxu0 %v99
    %163 = vmatprep.subr.mxu0 0.0
    %164 = vmatpush1.msra.mxu0 %v100
    %165 = vmatprep.mubr.f32.mxu0 %v68
    %166 = vmatmul.mubr.f32.gmra.mrb[0].mxu0 %v67
    %v167 = vpop.f32.mrb[0].mxu0
    %v168 = vadd.f32 0.0, %v167
    %v169 = vpop.f32.mrb[0].mxu0
    %170 = vdwg.mxu0
    %171 = vst [vmem:[#allocation5] sm:$0xff] %v168
    // Predicated region
    $region14: #{tpu_custom_call.1} parent=1 // pred_check
      _
    $region15: #{tpu_custom_call.1} parent=1 // pred_check_branch
      %173 = sbr.rel (0) target = $region17
    $region16: #{tpu_custom_call.1} parent=1 // pred_region
      %s175 = ssub.s32 128, 128
      %176 = vsyncadd [#allocation4], %s175
      %s178 = sshll.u32 [#allocation5], 4
      %s179 = int_to_ptr.vmem [resolvable:$true] %s178
      %181 = dma.vmem_to_hbm [thread:$0]  %s179, 128, %s2, [#allocation4]
    $region17: #{tpu_custom_call.1} parent=1 // pred_fallthru
      _
    // Predicated region
    $region18: #{tpu_custom_call.1} parent=1 // pred_check
      _
    $region19: #{tpu_custom_call.1} parent=1 // pred_check_branch
      %183 = sbr.rel (0) target = $region21
    $region20: #{tpu_custom_call.1} parent=1 // pred_region
      %184 = dma.done [#allocation4], 128
    $region21: #{tpu_custom_call.1} parent=1 // pred_fallthru
      _
    %185 = vsyncpa [#allocation3], 1
    %186 = vsyncpa [#allocation4], 1

// kernel: tpu_custom_call.1
$region0: #{tpu_custom_call.1}
  #allocation0 [shape = 'u32[]', space=smem, size = 0x4, offset = 0x4, fixed_abs, tag = 'smem constant byte address 0x4 - core index']
  #allocation1 [shape = 'u32[144,128]{1,0:T(1,128)}', space=vmem, size = 0x12000, scoped, tag = 'internal scratch']
  %s0 = inlined_call_operand.vmem [shape: s32[8,4], index: 0, kind: input, shape index: {}]
  %s1 = inlined_call_operand.hbm [shape: f32[256,128], index: 1, kind: input, shape index: {}]
  %s2 = inlined_call_operand.hbm [shape: f32[8,128], index: 2, kind: output, shape index: {}]
  %s3 = sld [smem:[#allocation0]]
  $region22: #{tpu_custom_call.1} parent=0
    _
  %s5 = ssub.s32 1, %s3
  %s6 = scalar_select 0, %s5, %s3
  $region1: #{tpu_custom_call.1} parent=0
    #allocation2 [shape = 'u8[131072]{0}', space=vmem, size = 0x20000, scoped, tag = 'input window, operand 1, single buffered']
    #allocation3 [shape = 's32[1]{0}', space=sflag, size = 0x4, scoped, tag = 'scoped memory for tpu_custom_call.1']
    #allocation4 [shape = 's32[1]{0}', space=sflag, size = 0x4, scoped, tag = 'scoped memory for tpu_custom_call.1']
    #allocation5 [shape = 'u8[4096]{0}', space=vmem, size = 0x1000, scoped, tag = 'output window, operand 0, single buffered']
    %7 = vsyncpa [#allocation3], 0
    %8 = vsyncpa [#allocation4], 0
    // Predicated region
    $region2: #{tpu_custom_call.1} parent=1 // pred_check
      _
    $region3: #{tpu_custom_call.1} parent=1 // pred_check_branch
      %10 = sbr.rel (0) target = $region5
    $region4: #{tpu_custom_call.1} parent=1 // pred_region
      _
    $region5: #{tpu_custom_call.1} parent=1 // pred_fallthru
      _
    // Predicated region
    $region6: #{tpu_custom_call.1} parent=1 // pred_check
      _
    $region7: #{tpu_custom_call.1} parent=1 // pred_check_branch
      %12 = sbr.rel (0) target = $region9
    $region8: #{tpu_custom_call.1} parent=1 // pred_region
      %s14 = ssub.s32 4096, 4096
      %15 = vsyncadd [#allocation3], %s14
      %s16 = sshll.u32 [#allocation2], 4
      %s17 = int_to_ptr.vmem [resolvable:$true] %s16
      %22 = dma.hbm_to_vmem [thread:$0]  %s1, 4096, %s17, [#allocation3], 128, 128, 8
    $region9: #{tpu_custom_call.1} parent=1 // pred_fallthru
      _
    // Predicated region
    $region10: #{tpu_custom_call.1} parent=1 // pred_check
      _
    $region11: #{tpu_custom_call.1} parent=1 // pred_check_branch
      %24 = sbr.rel (0) target = $region13
    $region12: #{tpu_custom_call.1} parent=1 // pred_region
      %25 = dma.done [#allocation3], 4096
    $region13: #{tpu_custom_call.1} parent=1 // pred_fallthru
      _
    %v26 = vld [vmem:[%s0] sm:$0xff]
    %s27 = smul.u32 0, 256
    %v28 = vlaneseq
    %v29 = vand.u32 %v28, 127
    %v30 = vadd.s32 %v29, 128
    %v31 = vstv %s27
    %v32 = vsub.s32 %v26, %v31
    %33 = vset.pattern.permute.xlu0 0
    %34 = vperm.xlu0 %33, %v32
    %v35 = vpop.permute.xlu0 %34
    %vm36 = vcmp.eq.s32.totalorder %v29, %v35
    %vm37 = vcmp.eq.s32.totalorder %v30, %v35
    %v38 = vadd.s32 %v26, 64
    %v39 = vsub.s32 %v38, %v31
    %40 = vset.pattern.permute.xlu0 1
    %41 = vperm.xlu0 %40, %v39
    %v42 = vpop.permute.xlu0 %41
    %vm43 = vcmp.eq.s32.totalorder %v29, %v42
    %vm44 = vcmp.eq.s32.totalorder %v30, %v42
    %vm45 = vmor %vm36, %vm43
    %vm46 = vmor %vm37, %vm44
    %v47 = vadd.s32 %v26, 128
    %v48 = vsub.s32 %v47, %v31
    %49 = vset.pattern.permute.xlu0 2
    %50 = vperm.xlu0 %49, %v48
    %v51 = vpop.permute.xlu0 %50
    %vm52 = vcmp.eq.s32.totalorder %v29, %v51
    %vm53 = vcmp.eq.s32.totalorder %v30, %v51
    %vm54 = vmor %vm45, %vm52
    %vm55 = vmor %vm46, %vm53
    %v56 = vadd.s32 %v26, 192
    %v57 = vsub.s32 %v56, %v31
    %58 = vset.pattern.permute.xlu0 3
    %59 = vperm.xlu0 %58, %v57
    %v60 = vpop.permute.xlu0 %59
    %vm61 = vcmp.eq.s32.totalorder %v29, %v60
    %vm62 = vcmp.eq.s32.totalorder %v30, %v60
    %vm63 = vmor %vm54, %vm61
    %vm64 = vmor %vm55, %vm62
    %v65 = vsel %vm63, 1, 0
    %v66 = vsel %vm64, 1, 0
    %v67 = vcvt.s32.f32 %v65
    %v68 = vcvt.s32.f32 %v66
    %v69 = vld [vmem:[#allocation2] sm:$0xff]
    %v70 = vld [vmem:[#allocation2 + $0x8] sm:$0xff]
    %v71 = vld [vmem:[#allocation2 + $0x10] sm:$0xff]
    %v72 = vld [vmem:[#allocation2 + $0x18] sm:$0xff]
    %v73 = vld [vmem:[#allocation2 + $0x20] sm:$0xff]
    %v74 = vld [vmem:[#allocation2 + $0x28] sm:$0xff]
    %v75 = vld [vmem:[#allocation2 + $0x30] sm:$0xff]
    %v76 = vld [vmem:[#allocation2 + $0x38] sm:$0xff]
    %v77 = vld [vmem:[#allocation2 + $0x40] sm:$0xff]
    %v78 = vld [vmem:[#allocation2 + $0x48] sm:$0xff]
    %v79 = vld [vmem:[#allocation2 + $0x50] sm:$0xff]
    %v80 = vld [vmem:[#allocation2 + $0x58] sm:$0xff]
    %v81 = vld [vmem:[#allocation2 + $0x60] sm:$0xff]
    %v82 = vld [vmem:[#allocation2 + $0x68] sm:$0xff]
    %v83 = vld [vmem:[#allocation2 + $0x70] sm:$0xff]
    %v84 = vld [vmem:[#allocation2 + $0x78] sm:$0xff]
    %v85 = vld [vmem:[#allocation2 + $0x80] sm:$0xff]
    %v86 = vld [vmem:[#allocation2 + $0x88] sm:$0xff]
    %v87 = vld [vmem:[#allocation2 + $0x90] sm:$0xff]
    %v88 = vld [vmem:[#allocation2 + $0x98] sm:$0xff]
    %v89 = vld [vmem:[#allocation2 + $0xa0] sm:$0xff]
    %v90 = vld [vmem:[#allocation2 + $0xa8] sm:$0xff]
    %v91 = vld [vmem:[#allocation2 + $0xb0] sm:$0xff]
    %v92 = vld [vmem:[#allocation2 + $0xb8] sm:$0xff]
    %v93 = vld [vmem:[#allocation2 + $0xc0] sm:$0xff]
    %v94 = vld [vmem:[#allocation2 + $0xc8] sm:$0xff]
    %v95 = vld [vmem:[#allocation2 + $0xd0] sm:$0xff]
    %v96 = vld [vmem:[#allocation2 + $0xd8] sm:$0xff]
    %v97 = vld [vmem:[#allocation2 + $0xe0] sm:$0xff]
    %v98 = vld [vmem:[#allocation2 + $0xe8] sm:$0xff]
    %v99 = vld [vmem:[#allocation2 + $0xf0] sm:$0xff]
    %v100 = vld [vmem:[#allocation2 + $0xf8] sm:$0xff]
    %101 = vmatprep.subr.mxu0 0.0
    %102 = vmatpush1.msra.mxu0 %v69
    %103 = vmatprep.subr.mxu0 0.0
    %104 = vmatpush1.msra.mxu0 %v70
    %105 = vmatprep.subr.mxu0 0.0
    %106 = vmatpush1.msra.mxu0 %v71
    %107 = vmatprep.subr.mxu0 0.0
    %108 = vmatpush1.msra.mxu0 %v72
    %109 = vmatprep.subr.mxu0 0.0
    %110 = vmatpush1.msra.mxu0 %v73
    %111 = vmatprep.subr.mxu0 0.0
    %112 = vmatpush1.msra.mxu0 %v74
    %113 = vmatprep.subr.mxu0 0.0
    %114 = vmatpush1.msra.mxu0 %v75
    %115 = vmatprep.subr.mxu0 0.0
    %116 = vmatpush1.msra.mxu0 %v76
    %117 = vmatprep.subr.mxu0 0.0
    %118 = vmatpush1.msra.mxu0 %v77
    %119 = vmatprep.subr.mxu0 0.0
    %120 = vmatpush1.msra.mxu0 %v78
    %121 = vmatprep.subr.mxu0 0.0
    %122 = vmatpush1.msra.mxu0 %v79
    %123 = vmatprep.subr.mxu0 0.0
    %124 = vmatpush1.msra.mxu0 %v80
    %125 = vmatprep.subr.mxu0 0.0
    %126 = vmatpush1.msra.mxu0 %v81
    %127 = vmatprep.subr.mxu0 0.0
    %128 = vmatpush1.msra.mxu0 %v82
    %129 = vmatprep.subr.mxu0 0.0
    %130 = vmatpush1.msra.mxu0 %v83
    %131 = vmatprep.subr.mxu0 0.0
    %132 = vmatpush1.msra.mxu0 %v84
    %133 = vmatprep.subr.mxu0 0.0
    %134 = vmatpush1.msra.mxu0 %v85
    %135 = vmatprep.subr.mxu0 0.0
    %136 = vmatpush1.msra.mxu0 %v86
    %137 = vmatprep.subr.mxu0 0.0
    %138 = vmatpush1.msra.mxu0 %v87
    %139 = vmatprep.subr.mxu0 0.0
    %140 = vmatpush1.msra.mxu0 %v88
    %141 = vmatprep.subr.mxu0 0.0
    %142 = vmatpush1.msra.mxu0 %v89
    %143 = vmatprep.subr.mxu0 0.0
    %144 = vmatpush1.msra.mxu0 %v90
    %145 = vmatprep.subr.mxu0 0.0
    %146 = vmatpush1.msra.mxu0 %v91
    %147 = vmatprep.subr.mxu0 0.0
    %148 = vmatpush1.msra.mxu0 %v92
    %149 = vmatprep.subr.mxu0 0.0
    %150 = vmatpush1.msra.mxu0 %v93
    %151 = vmatprep.subr.mxu0 0.0
    %152 = vmatpush1.msra.mxu0 %v94
    %153 = vmatprep.subr.mxu0 0.0
    %154 = vmatpush1.msra.mxu0 %v95
    %155 = vmatprep.subr.mxu0 0.0
    %156 = vmatpush1.msra.mxu0 %v96
    %157 = vmatprep.subr.mxu0 0.0
    %158 = vmatpush1.msra.mxu0 %v97
    %159 = vmatprep.subr.mxu0 0.0
    %160 = vmatpush1.msra.mxu0 %v98
    %161 = vmatprep.subr.mxu0 0.0
    %162 = vmatpush1.msra.mxu0 %v99
    %163 = vmatprep.subr.mxu0 0.0
    %164 = vmatpush1.msra.mxu0 %v100
    %165 = vmatprep.mubr.f32.mxu0 %v68
    %166 = vmatmul.mubr.f32.gmra.mrb[0].mxu0 %v67
    %v167 = vpop.f32.mrb[0].mxu0
    %v168 = vadd.f32 0.0, %v167
    %v169 = vpop.f32.mrb[0].mxu0
    %170 = vdwg.mxu0
    %171 = vst [vmem:[#allocation5] sm:$0xff] %v168
    // Predicated region
    $region14: #{tpu_custom_call.1} parent=1 // pred_check
      _
    $region15: #{tpu_custom_call.1} parent=1 // pred_check_branch
      %173 = sbr.rel (0) target = $region17
    $region16: #{tpu_custom_call.1} parent=1 // pred_region
      %s175 = ssub.s32 128, 128
      %176 = vsyncadd [#allocation4], %s175
      %s178 = sshll.u32 [#allocation5], 4
      %s179 = int_to_ptr.vmem [resolvable:$true] %s178
      %181 = dma.vmem_to_hbm [thread:$0]  %s179, 128, %s2, [#allocation4]
    $region17: #{tpu_custom_call.1} parent=1 // pred_fallthru
      _
    // Predicated region
    $region18: #{tpu_custom_call.1} parent=1 // pred_check
      _
    $region19: #{tpu_custom_call.1} parent=1 // pred_check_branch
      %183 = sbr.rel (0) target = $region21
    $region20: #{tpu_custom_call.1} parent=1 // pred_region
      %184 = dma.done [#allocation4], 128
    $region21: #{tpu_custom_call.1} parent=1 // pred_fallthru
      _
    %185 = vsyncpa [#allocation3], 1
    %186 = vsyncpa [#allocation4], 1

</llo_original>
